<compile_context>
chip_gen: v7x
topology: tpu7x:2x2x1
jax: 0.10.0
libtpu: 0.0.40
codegen_flags: <defaults>
</compile_context>

<pallas_src>
from dataclasses import dataclass
from functools import partial

import jax
import jax.numpy as jnp
from jax.experimental import pallas as pl
from jax.experimental.pallas import tpu as pltpu

LANE = 128
SUBLANE = 8
OUT_DIM = 20          # flat RobotAction size
OUT_PAD = 128         # lane-dense output slab width


@dataclass
class RobotAction:
    left_pos: jnp.ndarray
    left_rot: jnp.ndarray
    left_gripper: jnp.ndarray
    right_pos: jnp.ndarray
    right_rot: jnp.ndarray
    right_gripper: jnp.ndarray


def _round_up(x: int, m: int) -> int:
    return ((x + m - 1) // m) * m


def _choose_tb(B: int) -> int:
    """Batch tile: one sublane-aligned tile for small B; for large B pick the tile
    in [256, 512] that minimizes padding of the last grid step (so e.g. B=300 does
    not pad to 512 rows of wasted full-D matmul)."""
    if B <= 512:
        return max(SUBLANE, _round_up(B, SUBLANE))
    best_tb, best_pad = 512, _round_up(B, 512) - B
    tb = 512 - SUBLANE
    while tb >= 256:
        pad = _round_up(B, tb) - B
        if pad < best_pad:
            best_tb, best_pad = tb, pad
        tb -= SUBLANE
    return best_tb


def _mlp_kernel(x_ref, w1_ref, w2_ref, bias_ref, o_ref):
    # x_ref:    [TB, Dp]        f32  (batch tile; cast to bf16 here, saves an HBM round trip)
    # w1_ref:   [Dp, Dp]        bf16 (resident: constant index_map, single-buffered)
    # w2_ref:   [Dp, OUT_PAD]   bf16 (resident, single-buffered)
    # bias_ref: [2, Dp]         f32  (row 0 = b1, row 1[:OUT_PAD] = b2)
    # o_ref:    [TB, OUT_PAD]   f32  (lane-dense store -> unmasked vst)
    xb = x_ref[...].astype(jnp.bfloat16)
    h = jnp.dot(xb, w1_ref[...], preferred_element_type=jnp.float32)
    h = jnp.maximum(h + bias_ref[0:1, :], 0.0)           # bias add + ReLU in f32 on VPU
    out = jnp.dot(h.astype(jnp.bfloat16), w2_ref[...],
                  preferred_element_type=jnp.float32)
    o_ref[...] = out + bias_ref[1:2, :OUT_PAD]


def prepare_params(params):
    """One-time pad + bf16 cast of the weights. Call once at parameter load time and
    reuse the result for every forward (per-call re-cast tripled weight HBM traffic)."""
    w1, b1, w2, b2 = params["w1"], params["b1"], params["w2"], params["b2"]
    D = w1.shape[0]
    out_dim = w2.shape[1]
    Dp = _round_up(D, LANE)
    assert out_dim <= OUT_PAD <= Dp  # bias row 1 slice relies on Dp >= OUT_PAD
    w1p = jnp.zeros((Dp, Dp), jnp.bfloat16).at[:D, :D].set(w1.astype(jnp.bfloat16))
    w2p = jnp.zeros((Dp, OUT_PAD), jnp.bfloat16).at[:D, :out_dim].set(
        w2.astype(jnp.bfloat16))
    bias = (jnp.zeros((2, Dp), jnp.float32)
            .at[0, :D].set(b1.astype(jnp.float32))
            .at[1, :out_dim].set(b2.astype(jnp.float32)))
    return {"w1p": w1p, "w2p": w2p, "bias": bias, "out_dim": out_dim}


@partial(jax.jit, static_argnames=("out_dim",))
def _mlp_forward(x, w1p, w2p, bias, *, out_dim):
    B, D = x.shape
    Dp = w1p.shape[0]
    TB = _choose_tb(B)
    Bp = _round_up(B, TB)

    # Pad x only when actually needed; the aligned fast path (D % 128 == 0, B fits the
    # tile) passes x straight into the kernel in f32 with zero extra copies.
    if D != Dp or B != Bp:
        xp = jnp.zeros((Bp, Dp), x.dtype).at[:B, :D].set(x)
    else:
        xp = x

    # Constant-index (resident) operands: single-buffer them — double buffering buys
    # nothing for a constant index_map and would double resident-weight VMEM.
    resident = pl.Buffered(1)

    flops = 2 * Bp * Dp * Dp + 2 * Bp * Dp * OUT_PAD
    bytes_accessed = (xp.size * 4 + w1p.size * 2 + w2p.size * 2
                      + bias.size * 4 + Bp * OUT_PAD * 4)

    # TODO(synk): for hidden_dim >= ~4096 the fully resident [Dp, Dp] bf16 W1 no longer
    # fits v7x VMEM; add a K-reduction grid axis ("arbitrary") with an f32 accumulator.
    out_pad = pl.pallas_call(
        _mlp_kernel,
        out_shape=jax.ShapeDtypeStruct((Bp, OUT_PAD), jnp.float32),
        grid=(Bp // TB,),
        in_specs=[
            pl.BlockSpec((TB, Dp), lambda i: (i, 0)),                            # x tile
            pl.BlockSpec((Dp, Dp), lambda i: (0, 0), pipeline_mode=resident),    # W1
            pl.BlockSpec((Dp, OUT_PAD), lambda i: (0, 0), pipeline_mode=resident),  # W2
            pl.BlockSpec((2, Dp), lambda i: (0, 0), pipeline_mode=resident),     # biases
        ],
        out_specs=pl.BlockSpec((TB, OUT_PAD), lambda i: (i, 0)),
        compiler_params=pltpu.CompilerParams(
            dimension_semantics=("parallel",),   # megacore splits rows once B spans >=2 tiles
        ),
        cost_estimate=pl.CostEstimate(
            flops=flops, transcendentals=0, bytes_accessed=bytes_accessed),
    )(xp, w1p, w2p, bias)

    # Single slice back to the real [B, out_dim]; RobotAction field split stays outside
    # the jitted hot path.
    return out_pad[:B, :out_dim]


def action_predictor_mlp(x, prepped):
    """x: [B, D] f32 -> [B, 20] f32 via Linear->ReLU->Linear in one Pallas kernel."""
    return _mlp_forward(x, prepped["w1p"], prepped["w2p"], prepped["bias"],
                        out_dim=prepped["out_dim"])


def robot_action_from_tensor(t: jnp.ndarray) -> RobotAction:
    # Matches RobotAction.from_tensor; called outside the jitted hot path.
    return RobotAction(
        left_pos=t[..., 0:3],
        left_rot=t[..., 3:9],
        left_gripper=t[..., 9:10],
        right_pos=t[..., 10:13],
        right_rot=t[..., 13:19],
        right_gripper=t[..., 19:20],
    )


def action_predictor_forward(x, prepped):
    return robot_action_from_tensor(action_predictor_mlp(x, prepped))


def init_params(key, hidden_dim: int, out_dim: int = OUT_DIM):
    # Mimics nn.Linear uniform(-1/sqrt(fan_in), 1/sqrt(fan_in)); weights stored [in, out].
    k1, k2, k3, k4 = jax.random.split(key, 4)
    bound = 1.0 / jnp.sqrt(hidden_dim)
    w1 = jax.random.uniform(k1, (hidden_dim, hidden_dim), jnp.float32, -bound, bound)
    b1 = jax.random.uniform(k2, (hidden_dim,), jnp.float32, -bound, bound)
    w2 = jax.random.uniform(k3, (hidden_dim, out_dim), jnp.float32, -bound, bound)
    b2 = jax.random.uniform(k4, (out_dim,), jnp.float32, -bound, bound)
    return {"w1": w1, "b1": b1, "w2": w2, "b2": b2}


def _reference(x, params):
    h = jnp.maximum(x @ params["w1"] + params["b1"], 0.0)
    return h @ params["w2"] + params["b2"]


def _flatten(action: RobotAction) -> jnp.ndarray:
    return jnp.concatenate(
        [action.left_pos, action.left_rot, action.left_gripper,
         action.right_pos, action.right_rot, action.right_gripper], axis=-1)


if __name__ == "__main__":
    key = jax.random.PRNGKey(0)
    k_params, k_x, k_params2, k_x2 = jax.random.split(key, 4)

    # ModelConfig defaults: batch_size=8, hidden_dim=512 (already 128-aligned).
    B, D = 8, 512
    params = init_params(k_params, D)
    prepped = prepare_params(params)          # one-time weight pad + bf16 cast
    x = jax.random.normal(k_x, (B, D), jnp.float32)

    flat = action_predictor_mlp(x, prepped)
    jax.block_until_ready(flat)
    assert flat.shape == (B, OUT_DIM)

    # bf16 matmul operands -> compare to f32 reference with a loose tolerance.
    ref = _reference(x, params)
    assert jnp.allclose(flat, ref, atol=5e-2, rtol=5e-2), "mismatch vs reference"

    action = action_predictor_forward(x, prepped)
    full = _flatten(action)
    jax.block_until_ready(full)
    assert full.shape == (B, OUT_DIM)
    assert jnp.allclose(full, ref, atol=5e-2, rtol=5e-2), "mismatch vs reference (fields)"

    # Exercise the padding path (non-aligned B and D).
    B2, D2 = 20, 96
    params2 = init_params(k_params2, D2)
    prepped2 = prepare_params(params2)
    x2 = jax.random.normal(k_x2, (B2, D2), jnp.float32)
    full2 = _flatten(action_predictor_forward(x2, prepped2))
    jax.block_until_ready(full2)
    ref2 = _reference(x2, params2)
    assert full2.shape == (B2, OUT_DIM)
    assert jnp.allclose(full2, ref2, atol=5e-2, rtol=5e-2), "mismatch vs reference (padded)"

    print("KERNEL_OK")
</pallas_src>

<mosaic_0001>
module attributes {stable_mosaic.version = 11 : i64} {
  func.func @_mlp_kernel(%arg0: i32, %arg1: memref<8x512xf32, #tpu.memory_space<vmem>>, %arg2: memref<512x512xbf16, #tpu.memory_space<vmem>>, %arg3: memref<512x128xbf16, #tpu.memory_space<vmem>>, %arg4: memref<2x512xf32, #tpu.memory_space<vmem>>, %arg5: memref<8x128xf32, #tpu.memory_space<vmem>>) attributes {dimension_semantics = [#tpu.dimension_semantics<parallel>], iteration_bounds = array<i64: 1>, scalar_prefetch = 0 : i64, scratch_operands = 0 : i64, tpu.core_type = #tpu.core_type<tc>, window_params = [{transform_indices = @transform_0, window_bounds = array<i64: 8, 512>}, {pipeline_mode = #tpu.pipeline_mode<synchronous>, transform_indices = @transform_1, window_bounds = array<i64: 512, 512>}, {pipeline_mode = #tpu.pipeline_mode<synchronous>, transform_indices = @transform_2, window_bounds = array<i64: 512, 128>}, {pipeline_mode = #tpu.pipeline_mode<synchronous>, transform_indices = @transform_3, window_bounds = array<i64: 2, 512>}, {transform_indices = @transform_4, window_bounds = array<i64: 8, 128>}]} {
    %c0 = arith.constant 0 : index
    %c0_0 = arith.constant 0 : index
    %0 = vector.load %arg1[%c0, %c0_0] : memref<8x512xf32, #tpu.memory_space<vmem>>, vector<8x512xf32>
    %1 = arith.truncf %0 : vector<8x512xf32> to vector<8x512xbf16>
    %c0_1 = arith.constant 0 : index
    %c0_2 = arith.constant 0 : index
    %2 = vector.load %arg2[%c0_1, %c0_2] : memref<512x512xbf16, #tpu.memory_space<vmem>>, vector<512x512xbf16>
    %cst = arith.constant dense<0.000000e+00> : vector<8x512xf32>
    %3 = tpu.matmul %1, %2, %cst {dimension_numbers = #tpu.dot_dimension_numbers<[1], [0], [0], [1], [0, 0, 1, 1], [], []>} : vector<8x512xbf16>, vector<512x512xbf16>, vector<8x512xf32> -> vector<8x512xf32>
    %c0_3 = arith.constant 0 : index
    %c0_4 = arith.constant 0 : index
    %4 = vector.load %arg4[%c0_3, %c0_4] : memref<2x512xf32, #tpu.memory_space<vmem>>, vector<1x512xf32>
    %5 = vector.broadcast %4 : vector<1x512xf32> to vector<8x512xf32>
    %6 = arith.addf %3, %5 : vector<8x512xf32>
    %cst_5 = arith.constant 0.000000e+00 : f32
    %7 = vector.broadcast %cst_5 : f32 to vector<8x512xf32>
    %8 = arith.maximumf %6, %7 : vector<8x512xf32>
    %9 = arith.truncf %8 : vector<8x512xf32> to vector<8x512xbf16>
    %c0_6 = arith.constant 0 : index
    %c0_7 = arith.constant 0 : index
    %10 = vector.load %arg3[%c0_6, %c0_7] : memref<512x128xbf16, #tpu.memory_space<vmem>>, vector<512x128xbf16>
    %cst_8 = arith.constant dense<0.000000e+00> : vector<8x128xf32>
    %11 = tpu.matmul %9, %10, %cst_8 {dimension_numbers = #tpu.dot_dimension_numbers<[1], [0], [0], [1], [0, 0, 1, 1], [], []>} : vector<8x512xbf16>, vector<512x128xbf16>, vector<8x128xf32> -> vector<8x128xf32>
    %c1 = arith.constant 1 : index
    %c0_9 = arith.constant 0 : index
    %12 = vector.load %arg4[%c1, %c0_9] : memref<2x512xf32, #tpu.memory_space<vmem>>, vector<1x128xf32>
    %13 = vector.broadcast %12 : vector<1x128xf32> to vector<8x128xf32>
    %14 = arith.addf %11, %13 : vector<8x128xf32>
    %c0_10 = arith.constant 0 : index
    %c0_11 = arith.constant 0 : index
    %15 = vector.load %arg5[%c0_10, %c0_11] : memref<8x128xf32, #tpu.memory_space<vmem>>, vector<8x128xf32>
    tpu.vector_store %arg5[%c0_10, %c0_11], %14 {strides = array<i32>} : memref<8x128xf32, #tpu.memory_space<vmem>>, vector<8x128xf32>,
    return
  }
  func.func @transform_0(%arg0: i32) -> (i32, i32) {
    %c0_i32 = arith.constant 0 : i32
    %c0_i32_0 = arith.constant 0 : i32
    return %arg0, %c0_i32 : i32, i32
  }
  func.func @transform_1(%arg0: i32) -> (i32, i32) {
    %c0_i32 = arith.constant 0 : i32
    %c0_i32_0 = arith.constant 0 : i32
    %c0_i32_1 = arith.constant 0 : i32
    return %c0_i32, %c0_i32_0 : i32, i32
  }
  func.func @transform_2(%arg0: i32) -> (i32, i32) {
    %c0_i32 = arith.constant 0 : i32
    %c0_i32_0 = arith.constant 0 : i32
    %c0_i32_1 = arith.constant 0 : i32
    return %c0_i32, %c0_i32_0 : i32, i32
  }
  func.func @transform_3(%arg0: i32) -> (i32, i32) {
    %c0_i32 = arith.constant 0 : i32
    %c0_i32_0 = arith.constant 0 : i32
    %c0_i32_1 = arith.constant 0 : i32
    return %c0_i32, %c0_i32_0 : i32, i32
  }
  func.func @transform_4(%arg0: i32) -> (i32, i32) {
    %c0_i32 = arith.constant 0 : i32
    %c0_i32_0 = arith.constant 0 : i32
    return %arg0, %c0_i32 : i32, i32
  }
}

</mosaic_0001>

<llo_original>
// kernel: _mlp_forward.1
$region0: #{_mlp_forward.1}
  #allocation0 [shape = 'u32[]', space=smem, size = 0x4, offset = 0x4, fixed_abs, tag = 'smem constant byte address 0x4 - core index']
  #allocation1 [shape = 'u32[144,128]{1,0:T(1,128)}', space=vmem, size = 0x12000, scoped, tag = 'internal scratch']
  %s0 = inlined_call_operand.hbm [shape: f32[8,512], index: 0, kind: input, shape index: {}]
  %s1 = inlined_call_operand.hbm [shape: bf16[512,512], index: 1, kind: input, shape index: {}]
  %s2 = inlined_call_operand.hbm [shape: bf16[512,128], index: 2, kind: input, shape index: {}]
  %s3 = inlined_call_operand.vmem [shape: f32[2,512], index: 3, kind: input, shape index: {}]
  %s4 = inlined_call_operand.hbm [shape: f32[8,128], index: 4, kind: output, shape index: {}]
  %s5 = sld [smem:[#allocation0]]
  $region38: #{_mlp_forward.1} parent=0
    _
  %s7 = ssub.s32 1, %s5
  %s8 = scalar_select 0, %s7, %s5
  $region1: #{_mlp_forward.1} parent=0
    #allocation2 [shape = 'u8[16384]{0}', space=vmem, size = 0x4000, scoped, tag = 'input window, operand 0, single buffered']
    #allocation3 [shape = 's32[1]{0}', space=sflag, size = 0x4, scoped, tag = 'scoped memory for _mlp_forward.1']
    #allocation4 [shape = 's32[1]{0}', space=sflag, size = 0x4, scoped, tag = 'scoped memory for _mlp_forward.1']
    #allocation5 [shape = 'u8[524288]{0}', space=vmem, size = 0x80000, scoped, tag = 'input window, operand 1, single buffered']
    #allocation6 [shape = 's32[1]{0}', space=sflag, size = 0x4, scoped, tag = 'scoped memory for _mlp_forward.1']
    #allocation7 [shape = 'u8[131072]{0}', space=vmem, size = 0x20000, scoped, tag = 'input window, operand 2, single buffered']
    #allocation8 [shape = 'u8[4096]{0}', space=vmem, size = 0x1000, scoped, tag = 'output window, operand 0, single buffered']
    %9 = vsyncpa [#allocation3], 0
    %10 = vsyncpa [#allocation6], 0
    %11 = vsyncpa [#allocation4], 0
    // Predicated region
    $region2: #{_mlp_forward.1} parent=1 // pred_check
      _
    $region3: #{_mlp_forward.1} parent=1 // pred_check_branch
      %13 = sbr.rel (0) target = $region5
    $region4: #{_mlp_forward.1} parent=1 // pred_region
      %s15 = ssub.s32 512, 512
      %16 = vsyncadd [#allocation3], %s15
      %s18 = sshll.u32 [#allocation2], 4
      %s19 = int_to_ptr.vmem [resolvable:$true] %s18
      %21 = dma.hbm_to_vmem [thread:$0]  %s0, 512, %s19, [#allocation3]
    $region5: #{_mlp_forward.1} parent=1 // pred_fallthru
      _
    // Predicated region
    $region6: #{_mlp_forward.1} parent=1 // pred_check
      _
    $region7: #{_mlp_forward.1} parent=1 // pred_check_branch
      %23 = sbr.rel (0) target = $region9
    $region8: #{_mlp_forward.1} parent=1 // pred_region
      %s25 = ssub.s32 16384, 16384
      %26 = vsyncadd [#allocation6], %s25
      %s27 = sshll.u32 [#allocation5], 4
      %s28 = int_to_ptr.vmem [resolvable:$true] %s27
      %33 = dma.hbm_to_vmem [thread:$0]  %s1, 16384, %s28, [#allocation6], 256, 256, 16
    $region9: #{_mlp_forward.1} parent=1 // pred_fallthru
      _
    // Predicated region
    $region10: #{_mlp_forward.1} parent=1 // pred_check
      _
    $region11: #{_mlp_forward.1} parent=1 // pred_check_branch
      %35 = sbr.rel (0) target = $region13
    $region12: #{_mlp_forward.1} parent=1 // pred_region
      %s37 = ssub.s32 4096, 4096
      %38 = vsyncadd [#allocation6], %s37
      %s39 = sshll.u32 [#allocation7], 4
      %s40 = int_to_ptr.vmem [resolvable:$true] %s39
      %45 = dma.hbm_to_vmem [thread:$0]  %s2, 4096, %s40, [#allocation6], 64, 64, 4
    $region13: #{_mlp_forward.1} parent=1 // pred_fallthru
      _
    // Predicated region
    $region14: #{_mlp_forward.1} parent=1 // pred_check
      _
    $region15: #{_mlp_forward.1} parent=1 // pred_check_branch
      %47 = sbr.rel (0) target = $region17
    $region16: #{_mlp_forward.1} parent=1 // pred_region
      _
    $region17: #{_mlp_forward.1} parent=1 // pred_fallthru
      _
    // Predicated region
    $region18: #{_mlp_forward.1} parent=1 // pred_check
      _
    $region19: #{_mlp_forward.1} parent=1 // pred_check_branch
      %49 = sbr.rel (0) target = $region21
    $region20: #{_mlp_forward.1} parent=1 // pred_region
      %50 = dma.done [#allocation3], 512
    $region21: #{_mlp_forward.1} parent=1 // pred_fallthru
      _
    // Predicated region
    $region22: #{_mlp_forward.1} parent=1 // pred_check
      _
    $region23: #{_mlp_forward.1} parent=1 // pred_check_branch
      %52 = sbr.rel (0) target = $region25
    $region24: #{_mlp_forward.1} parent=1 // pred_region
      %53 = dma.done [#allocation6], 16384
    $region25: #{_mlp_forward.1} parent=1 // pred_fallthru
      _
    // Predicated region
    $region26: #{_mlp_forward.1} parent=1 // pred_check
      _
    $region27: #{_mlp_forward.1} parent=1 // pred_check_branch
      %55 = sbr.rel (0) target = $region29
    $region28: #{_mlp_forward.1} parent=1 // pred_region
      %56 = dma.done [#allocation6], 4096
    $region29: #{_mlp_forward.1} parent=1 // pred_fallthru
      _
    %v58 = vld [vmem:[#allocation2] sm:$0xff]
    %v59 = vld [vmem:[#allocation2 + $0x8] sm:$0xff]
    %v60 = vld [vmem:[#allocation2 + $0x10] sm:$0xff]
    %v61 = vld [vmem:[#allocation2 + $0x18] sm:$0xff]
    %v62 = vpack.c.bf16 %v58, %v58
    %v63 = vpack.c.bf16 %v59, %v59
    %v64 = vpack.c.bf16 %v60, %v60
    %v65 = vpack.c.bf16 %v61, %v61
    %v66 = vld [vmem:[#allocation5] sm:$0xff]
    %v67 = vld [vmem:[#allocation5 + $0x8] sm:$0xff]
    %v68 = vld [vmem:[#allocation5 + $0x10] sm:$0xff]
    %v69 = vld [vmem:[#allocation5 + $0x18] sm:$0xff]
    %v70 = vld [vmem:[#allocation5 + $0x20] sm:$0xff]
    %v71 = vld [vmem:[#allocation5 + $0x28] sm:$0xff]
    %v72 = vld [vmem:[#allocation5 + $0x30] sm:$0xff]
    %v73 = vld [vmem:[#allocation5 + $0x38] sm:$0xff]
    %v74 = vld [vmem:[#allocation5 + $0x40] sm:$0xff]
    %v75 = vld [vmem:[#allocation5 + $0x48] sm:$0xff]
    %v76 = vld [vmem:[#allocation5 + $0x50] sm:$0xff]
    %v77 = vld [vmem:[#allocation5 + $0x58] sm:$0xff]
    %v78 = vld [vmem:[#allocation5 + $0x60] sm:$0xff]
    %v79 = vld [vmem:[#allocation5 + $0x68] sm:$0xff]
    %v80 = vld [vmem:[#allocation5 + $0x70] sm:$0xff]
    %v81 = vld [vmem:[#allocation5 + $0x78] sm:$0xff]
    %v82 = vld [vmem:[#allocation5 + $0x80] sm:$0xff]
    %v83 = vld [vmem:[#allocation5 + $0x88] sm:$0xff]
    %v84 = vld [vmem:[#allocation5 + $0x90] sm:$0xff]
    %v85 = vld [vmem:[#allocation5 + $0x98] sm:$0xff]
    %v86 = vld [vmem:[#allocation5 + $0xa0] sm:$0xff]
    %v87 = vld [vmem:[#allocation5 + $0xa8] sm:$0xff]
    %v88 = vld [vmem:[#allocation5 + $0xb0] sm:$0xff]
    %v89 = vld [vmem:[#allocation5 + $0xb8] sm:$0xff]
    %v90 = vld [vmem:[#allocation5 + $0xc0] sm:$0xff]
    %v91 = vld [vmem:[#allocation5 + $0xc8] sm:$0xff]
    %v92 = vld [vmem:[#allocation5 + $0xd0] sm:$0xff]
    %v93 = vld [vmem:[#allocation5 + $0xd8] sm:$0xff]
    %v94 = vld [vmem:[#allocation5 + $0xe0] sm:$0xff]
    %v95 = vld [vmem:[#allocation5 + $0xe8] sm:$0xff]
    %v96 = vld [vmem:[#allocation5 + $0xf0] sm:$0xff]
    %v97 = vld [vmem:[#allocation5 + $0xf8] sm:$0xff]
    %v98 = vld [vmem:[#allocation5 + $0x100] sm:$0xff]
    %v99 = vld [vmem:[#allocation5 + $0x108] sm:$0xff]
    %v100 = vld [vmem:[#allocation5 + $0x110] sm:$0xff]
    %v101 = vld [vmem:[#allocation5 + $0x118] sm:$0xff]
    %v102 = vld [vmem:[#allocation5 + $0x120] sm:$0xff]
    %v103 = vld [vmem:[#allocation5 + $0x128] sm:$0xff]
    %v104 = vld [vmem:[#allocation5 + $0x130] sm:$0xff]
    %v105 = vld [vmem:[#allocation5 + $0x138] sm:$0xff]
    %v106 = vld [vmem:[#allocation5 + $0x140] sm:$0xff]
    %v107 = vld [vmem:[#allocation5 + $0x148] sm:$0xff]
    %v108 = vld [vmem:[#allocation5 + $0x150] sm:$0xff]
    %v109 = vld [vmem:[#allocation5 + $0x158] sm:$0xff]
    %v110 = vld [vmem:[#allocation5 + $0x160] sm:$0xff]
    %v111 = vld [vmem:[#allocation5 + $0x168] sm:$0xff]
    %v112 = vld [vmem:[#allocation5 + $0x170] sm:$0xff]
    %v113 = vld [vmem:[#allocation5 + $0x178] sm:$0xff]
    %v114 = vld [vmem:[#allocation5 + $0x180] sm:$0xff]
    %v115 = vld [vmem:[#allocation5 + $0x188] sm:$0xff]
    %v116 = vld [vmem:[#allocation5 + $0x190] sm:$0xff]
    %v117 = vld [vmem:[#allocation5 + $0x198] sm:$0xff]
    %v118 = vld [vmem:[#allocation5 + $0x1a0] sm:$0xff]
    %v119 = vld [vmem:[#allocation5 + $0x1a8] sm:$0xff]
    %v120 = vld [vmem:[#allocation5 + $0x1b0] sm:$0xff]
    %v121 = vld [vmem:[#allocation5 + $0x1b8] sm:$0xff]
    %v122 = vld [vmem:[#allocation5 + $0x1c0] sm:$0xff]
    %v123 = vld [vmem:[#allocation5 + $0x1c8] sm:$0xff]
    %v124 = vld [vmem:[#allocation5 + $0x1d0] sm:$0xff]
    %v125 = vld [vmem:[#allocation5 + $0x1d8] sm:$0xff]
    %v126 = vld [vmem:[#allocation5 + $0x1e0] sm:$0xff]
    %v127 = vld [vmem:[#allocation5 + $0x1e8] sm:$0xff]
    %v128 = vld [vmem:[#allocation5 + $0x1f0] sm:$0xff]
    %v129 = vld [vmem:[#allocation5 + $0x1f8] sm:$0xff]
    %v130 = vld [vmem:[#allocation5 + $0x200] sm:$0xff]
    %v131 = vld [vmem:[#allocation5 + $0x208] sm:$0xff]
    %v132 = vld [vmem:[#allocation5 + $0x210] sm:$0xff]
    %v133 = vld [vmem:[#allocation5 + $0x218] sm:$0xff]
    %v134 = vld [vmem:[#allocation5 + $0x220] sm:$0xff]
    %v135 = vld [vmem:[#allocation5 + $0x228] sm:$0xff]
    %v136 = vld [vmem:[#allocation5 + $0x230] sm:$0xff]
    %v137 = vld [vmem:[#allocation5 + $0x238] sm:$0xff]
    %v138 = vld [vmem:[#allocation5 + $0x240] sm:$0xff]
    %v139 = vld [vmem:[#allocation5 + $0x248] sm:$0xff]
    %v140 = vld [vmem:[#allocation5 + $0x250] sm:$0xff]
    %v141 = vld [vmem:[#allocation5 + $0x258] sm:$0xff]
    %v142 = vld [vmem:[#allocation5 + $0x260] sm:$0xff]
    %v143 = vld [vmem:[#allocation5 + $0x268] sm:$0xff]
    %v144 = vld [vmem:[#allocation5 + $0x270] sm:$0xff]
    %v145 = vld [vmem:[#allocation5 + $0x278] sm:$0xff]
    %v146 = vld [vmem:[#allocation5 + $0x280] sm:$0xff]
    %v147 = vld [vmem:[#allocation5 + $0x288] sm:$0xff]
    %v148 = vld [vmem:[#allocation5 + $0x290] sm:$0xff]
    %v149 = vld [vmem:[#allocation5 + $0x298] sm:$0xff]
    %v150 = vld [vmem:[#allocation5 + $0x2a0] sm:$0xff]
    %v151 = vld [vmem:[#allocation5 + $0x2a8] sm:$0xff]
    %v152 = vld [vmem:[#allocation5 + $0x2b0] sm:$0xff]
    %v153 = vld [vmem:[#allocation5 + $0x2b8] sm:$0xff]
    %v154 = vld [vmem:[#allocation5 + $0x2c0] sm:$0xff]
    %v155 = vld [vmem:[#allocation5 + $0x2c8] sm:$0xff]
    %v156 = vld [vmem:[#allocation5 + $0x2d0] sm:$0xff]
    %v157 = vld [vmem:[#allocation5 + $0x2d8] sm:$0xff]
    %v158 = vld [vmem:[#allocation5 + $0x2e0] sm:$0xff]
    %v159 = vld [vmem:[#allocation5 + $0x2e8] sm:$0xff]
    %v160 = vld [vmem:[#allocation5 + $0x2f0] sm:$0xff]
    %v161 = vld [vmem:[#allocation5 + $0x2f8] sm:$0xff]
    %v162 = vld [vmem:[#allocation5 + $0x300] sm:$0xff]
    %v163 = vld [vmem:[#allocation5 + $0x308] sm:$0xff]
    %v164 = vld [vmem:[#allocation5 + $0x310] sm:$0xff]
    %v165 = vld [vmem:[#allocation5 + $0x318] sm:$0xff]
    %v166 = vld [vmem:[#allocation5 + $0x320] sm:$0xff]
    %v167 = vld [vmem:[#allocation5 + $0x328] sm:$0xff]
    %v168 = vld [vmem:[#allocation5 + $0x330] sm:$0xff]
    %v169 = vld [vmem:[#allocation5 + $0x338] sm:$0xff]
    %v170 = vld [vmem:[#allocation5 + $0x340] sm:$0xff]
    %v171 = vld [vmem:[#allocation5 + $0x348] sm:$0xff]
    %v172 = vld [vmem:[#allocation5 + $0x350] sm:$0xff]
    %v173 = vld [vmem:[#allocation5 + $0x358] sm:$0xff]
    %v174 = vld [vmem:[#allocation5 + $0x360] sm:$0xff]
    %v175 = vld [vmem:[#allocation5 + $0x368] sm:$0xff]
    %v176 = vld [vmem:[#allocation5 + $0x370] sm:$0xff]
    %v177 = vld [vmem:[#allocation5 + $0x378] sm:$0xff]
    %v178 = vld [vmem:[#allocation5 + $0x380] sm:$0xff]
    %v179 = vld [vmem:[#allocation5 + $0x388] sm:$0xff]
    %v180 = vld [vmem:[#allocation5 + $0x390] sm:$0xff]
    %v181 = vld [vmem:[#allocation5 + $0x398] sm:$0xff]
    %v182 = vld [vmem:[#allocation5 + $0x3a0] sm:$0xff]
    %v183 = vld [vmem:[#allocation5 + $0x3a8] sm:$0xff]
    %v184 = vld [vmem:[#allocation5 + $0x3b0] sm:$0xff]
    %v185 = vld [vmem:[#allocation5 + $0x3b8] sm:$0xff]
    %v186 = vld [vmem:[#allocation5 + $0x3c0] sm:$0xff]
    %v187 = vld [vmem:[#allocation5 + $0x3c8] sm:$0xff]
    %v188 = vld [vmem:[#allocation5 + $0x3d0] sm:$0xff]
    %v189 = vld [vmem:[#allocation5 + $0x3d8] sm:$0xff]
    %v190 = vld [vmem:[#allocation5 + $0x3e0] sm:$0xff]
    %v191 = vld [vmem:[#allocation5 + $0x3e8] sm:$0xff]
    %v192 = vld [vmem:[#allocation5 + $0x3f0] sm:$0xff]
    %v193 = vld [vmem:[#allocation5 + $0x3f8] sm:$0xff]
    %v194 = vld [vmem:[%s3] ss:$2 sm:$0xf]
    %v196 = vlaneseq
    %v197 = vshrl.u32 %v196, 7
    %v198 = vsub.s32 0, %v197
    %v199 = vrot.slane %v194, %v198
    %v200 = vlaneseq
    %v201 = vshrl.u32 %v200, 7
    %v202 = vsub.s32 1, %v201
    %v203 = vrot.slane %v194, %v202
    %v204 = vlaneseq
    %v205 = vshrl.u32 %v204, 7
    %v206 = vsub.s32 2, %v205
    %v207 = vrot.slane %v194, %v206
    %v208 = vlaneseq
    %v209 = vshrl.u32 %v208, 7
    %v210 = vsub.s32 3, %v209
    %v211 = vrot.slane %v194, %v210
    %v344 = vunpack.c.l.b16 %v66
    %v345 = vunpack.c.h.b16 %v66
    %v346 = vunpack.c.l.b16 %v67
    %v347 = vunpack.c.h.b16 %v67
    %v348 = vunpack.c.l.b16 %v68
    %v349 = vunpack.c.h.b16 %v68
    %v350 = vunpack.c.l.b16 %v69
    %v351 = vunpack.c.h.b16 %v69
    %v352 = vunpack.c.l.b16 %v70
    %v353 = vunpack.c.h.b16 %v70
    %v354 = vunpack.c.l.b16 %v71
    %v355 = vunpack.c.h.b16 %v71
    %v356 = vunpack.c.l.b16 %v72
    %v357 = vunpack.c.h.b16 %v72
    %v358 = vunpack.c.l.b16 %v73
    %v359 = vunpack.c.h.b16 %v73
    %v360 = vunpack.c.l.b16 %v74
    %v361 = vunpack.c.h.b16 %v74
    %v362 = vunpack.c.l.b16 %v75
    %v363 = vunpack.c.h.b16 %v75
    %v364 = vunpack.c.l.b16 %v76
    %v365 = vunpack.c.h.b16 %v76
    %v366 = vunpack.c.l.b16 %v77
    %v367 = vunpack.c.h.b16 %v77
    %v368 = vunpack.c.l.b16 %v78
    %v369 = vunpack.c.h.b16 %v78
    %v370 = vunpack.c.l.b16 %v79
    %v371 = vunpack.c.h.b16 %v79
    %v372 = vunpack.c.l.b16 %v80
    %v373 = vunpack.c.h.b16 %v80
    %v374 = vunpack.c.l.b16 %v81
    %v375 = vunpack.c.h.b16 %v81
    %v376 = vunpack.c.l.b16 %v82
    %v377 = vunpack.c.h.b16 %v82
    %v378 = vunpack.c.l.b16 %v83
    %v379 = vunpack.c.h.b16 %v83
    %v380 = vunpack.c.l.b16 %v84
    %v381 = vunpack.c.h.b16 %v84
    %v382 = vunpack.c.l.b16 %v85
    %v383 = vunpack.c.h.b16 %v85
    %v384 = vunpack.c.l.b16 %v86
    %v385 = vunpack.c.h.b16 %v86
    %v386 = vunpack.c.l.b16 %v87
    %v387 = vunpack.c.h.b16 %v87
    %v388 = vunpack.c.l.b16 %v88
    %v389 = vunpack.c.h.b16 %v88
    %v390 = vunpack.c.l.b16 %v89
    %v391 = vunpack.c.h.b16 %v89
    %v392 = vunpack.c.l.b16 %v90
    %v393 = vunpack.c.h.b16 %v90
    %v394 = vunpack.c.l.b16 %v91
    %v395 = vunpack.c.h.b16 %v91
    %v396 = vunpack.c.l.b16 %v92
    %v397 = vunpack.c.h.b16 %v92
    %v398 = vunpack.c.l.b16 %v93
    %v399 = vunpack.c.h.b16 %v93
    %v400 = vunpack.c.l.b16 %v94
    %v401 = vunpack.c.h.b16 %v94
    %v402 = vunpack.c.l.b16 %v95
    %v403 = vunpack.c.h.b16 %v95
    %v404 = vunpack.c.l.b16 %v96
    %v405 = vunpack.c.h.b16 %v96
    %v406 = vunpack.c.l.b16 %v97
    %v407 = vunpack.c.h.b16 %v97
    %v408 = vunpack.c.l.b16 %v98
    %v409 = vunpack.c.h.b16 %v98
    %v410 = vunpack.c.l.b16 %v99
    %v411 = vunpack.c.h.b16 %v99
    %v412 = vunpack.c.l.b16 %v100
    %v413 = vunpack.c.h.b16 %v100
    %v414 = vunpack.c.l.b16 %v101
    %v415 = vunpack.c.h.b16 %v101
    %v416 = vunpack.c.l.b16 %v102
    %v417 = vunpack.c.h.b16 %v102
    %v418 = vunpack.c.l.b16 %v103
    %v419 = vunpack.c.h.b16 %v103
    %v420 = vunpack.c.l.b16 %v104
    %v421 = vunpack.c.h.b16 %v104
    %v422 = vunpack.c.l.b16 %v105
    %v423 = vunpack.c.h.b16 %v105
    %v424 = vunpack.c.l.b16 %v106
    %v425 = vunpack.c.h.b16 %v106
    %v426 = vunpack.c.l.b16 %v107
    %v427 = vunpack.c.h.b16 %v107
    %v428 = vunpack.c.l.b16 %v108
    %v429 = vunpack.c.h.b16 %v108
    %v430 = vunpack.c.l.b16 %v109
    %v431 = vunpack.c.h.b16 %v109
    %v432 = vunpack.c.l.b16 %v110
    %v433 = vunpack.c.h.b16 %v110
    %v434 = vunpack.c.l.b16 %v111
    %v435 = vunpack.c.h.b16 %v111
    %v436 = vunpack.c.l.b16 %v112
    %v437 = vunpack.c.h.b16 %v112
    %v438 = vunpack.c.l.b16 %v113
    %v439 = vunpack.c.h.b16 %v113
    %v440 = vunpack.c.l.b16 %v114
    %v441 = vunpack.c.h.b16 %v114
    %v442 = vunpack.c.l.b16 %v115
    %v443 = vunpack.c.h.b16 %v115
    %v444 = vunpack.c.l.b16 %v116
    %v445 = vunpack.c.h.b16 %v116
    %v446 = vunpack.c.l.b16 %v117
    %v447 = vunpack.c.h.b16 %v117
    %v448 = vunpack.c.l.b16 %v118
    %v449 = vunpack.c.h.b16 %v118
    %v450 = vunpack.c.l.b16 %v119
    %v451 = vunpack.c.h.b16 %v119
    %v452 = vunpack.c.l.b16 %v120
    %v453 = vunpack.c.h.b16 %v120
    %v454 = vunpack.c.l.b16 %v121
    %v455 = vunpack.c.h.b16 %v121
    %v456 = vunpack.c.l.b16 %v122
    %v457 = vunpack.c.h.b16 %v122
    %v458 = vunpack.c.l.b16 %v123
    %v459 = vunpack.c.h.b16 %v123
    %v460 = vunpack.c.l.b16 %v124
    %v461 = vunpack.c.h.b16 %v124
    %v462 = vunpack.c.l.b16 %v125
    %v463 = vunpack.c.h.b16 %v125
    %v464 = vunpack.c.l.b16 %v126
    %v465 = vunpack.c.h.b16 %v126
    %v466 = vunpack.c.l.b16 %v127
    %v467 = vunpack.c.h.b16 %v127
    %v468 = vunpack.c.l.b16 %v128
    %v469 = vunpack.c.h.b16 %v128
    %v470 = vunpack.c.l.b16 %v129
    %v471 = vunpack.c.h.b16 %v129
    %v472 = vunpack.c.l.b16 %v130
    %v473 = vunpack.c.h.b16 %v130
    %v474 = vunpack.c.l.b16 %v131
    %v475 = vunpack.c.h.b16 %v131
    %v476 = vunpack.c.l.b16 %v132
    %v477 = vunpack.c.h.b16 %v132
    %v478 = vunpack.c.l.b16 %v133
    %v479 = vunpack.c.h.b16 %v133
    %v480 = vunpack.c.l.b16 %v134
    %v481 = vunpack.c.h.b16 %v134
    %v482 = vunpack.c.l.b16 %v135
    %v483 = vunpack.c.h.b16 %v135
    %v484 = vunpack.c.l.b16 %v136
    %v485 = vunpack.c.h.b16 %v136
    %v486 = vunpack.c.l.b16 %v137
    %v487 = vunpack.c.h.b16 %v137
    %v488 = vunpack.c.l.b16 %v138
    %v489 = vunpack.c.h.b16 %v138
    %v490 = vunpack.c.l.b16 %v139
    %v491 = vunpack.c.h.b16 %v139
    %v492 = vunpack.c.l.b16 %v140
    %v493 = vunpack.c.h.b16 %v140
    %v494 = vunpack.c.l.b16 %v141
    %v495 = vunpack.c.h.b16 %v141
    %v496 = vunpack.c.l.b16 %v142
    %v497 = vunpack.c.h.b16 %v142
    %v498 = vunpack.c.l.b16 %v143
    %v499 = vunpack.c.h.b16 %v143
    %v500 = vunpack.c.l.b16 %v144
    %v501 = vunpack.c.h.b16 %v144
    %v502 = vunpack.c.l.b16 %v145
    %v503 = vunpack.c.h.b16 %v145
    %v504 = vunpack.c.l.b16 %v146
    %v505 = vunpack.c.h.b16 %v146
    %v506 = vunpack.c.l.b16 %v147
    %v507 = vunpack.c.h.b16 %v147
    %v508 = vunpack.c.l.b16 %v148
    %v509 = vunpack.c.h.b16 %v148
    %v510 = vunpack.c.l.b16 %v149
    %v511 = vunpack.c.h.b16 %v149
    %v512 = vunpack.c.l.b16 %v150
    %v513 = vunpack.c.h.b16 %v150
    %v514 = vunpack.c.l.b16 %v151
    %v515 = vunpack.c.h.b16 %v151
    %v516 = vunpack.c.l.b16 %v152
    %v517 = vunpack.c.h.b16 %v152
    %v518 = vunpack.c.l.b16 %v153
    %v519 = vunpack.c.h.b16 %v153
    %v520 = vunpack.c.l.b16 %v154
    %v521 = vunpack.c.h.b16 %v154
    %v522 = vunpack.c.l.b16 %v155
    %v523 = vunpack.c.h.b16 %v155
    %v524 = vunpack.c.l.b16 %v156
    %v525 = vunpack.c.h.b16 %v156
    %v526 = vunpack.c.l.b16 %v157
    %v527 = vunpack.c.h.b16 %v157
    %v528 = vunpack.c.l.b16 %v158
    %v529 = vunpack.c.h.b16 %v158
    %v530 = vunpack.c.l.b16 %v159
    %v531 = vunpack.c.h.b16 %v159
    %v532 = vunpack.c.l.b16 %v160
    %v533 = vunpack.c.h.b16 %v160
    %v534 = vunpack.c.l.b16 %v161
    %v535 = vunpack.c.h.b16 %v161
    %v536 = vunpack.c.l.b16 %v162
    %v537 = vunpack.c.h.b16 %v162
    %v538 = vunpack.c.l.b16 %v163
    %v539 = vunpack.c.h.b16 %v163
    %v540 = vunpack.c.l.b16 %v164
    %v541 = vunpack.c.h.b16 %v164
    %v542 = vunpack.c.l.b16 %v165
    %v543 = vunpack.c.h.b16 %v165
    %v544 = vunpack.c.l.b16 %v166
    %v545 = vunpack.c.h.b16 %v166
    %v546 = vunpack.c.l.b16 %v167
    %v547 = vunpack.c.h.b16 %v167
    %v548 = vunpack.c.l.b16 %v168
    %v549 = vunpack.c.h.b16 %v168
    %v550 = vunpack.c.l.b16 %v169
    %v551 = vunpack.c.h.b16 %v169
    %v552 = vunpack.c.l.b16 %v170
    %v553 = vunpack.c.h.b16 %v170
    %v554 = vunpack.c.l.b16 %v171
    %v555 = vunpack.c.h.b16 %v171
    %v556 = vunpack.c.l.b16 %v172
    %v557 = vunpack.c.h.b16 %v172
    %v558 = vunpack.c.l.b16 %v173
    %v559 = vunpack.c.h.b16 %v173
    %v560 = vunpack.c.l.b16 %v174
    %v561 = vunpack.c.h.b16 %v174
    %v562 = vunpack.c.l.b16 %v175
    %v563 = vunpack.c.h.b16 %v175
    %v564 = vunpack.c.l.b16 %v176
    %v565 = vunpack.c.h.b16 %v176
    %v566 = vunpack.c.l.b16 %v177
    %v567 = vunpack.c.h.b16 %v177
    %v568 = vunpack.c.l.b16 %v178
    %v569 = vunpack.c.h.b16 %v178
    %v570 = vunpack.c.l.b16 %v179
    %v571 = vunpack.c.h.b16 %v179
    %v572 = vunpack.c.l.b16 %v180
    %v573 = vunpack.c.h.b16 %v180
    %v574 = vunpack.c.l.b16 %v181
    %v575 = vunpack.c.h.b16 %v181
    %v576 = vunpack.c.l.b16 %v182
    %v577 = vunpack.c.h.b16 %v182
    %v578 = vunpack.c.l.b16 %v183
    %v579 = vunpack.c.h.b16 %v183
    %v580 = vunpack.c.l.b16 %v184
    %v581 = vunpack.c.h.b16 %v184
    %v582 = vunpack.c.l.b16 %v185
    %v583 = vunpack.c.h.b16 %v185
    %v584 = vunpack.c.l.b16 %v186
    %v585 = vunpack.c.h.b16 %v186
    %v586 = vunpack.c.l.b16 %v187
    %v587 = vunpack.c.h.b16 %v187
    %v588 = vunpack.c.l.b16 %v188
    %v589 = vunpack.c.h.b16 %v188
    %v590 = vunpack.c.l.b16 %v189
    %v591 = vunpack.c.h.b16 %v189
    %v592 = vunpack.c.l.b16 %v190
    %v593 = vunpack.c.h.b16 %v190
    %v594 = vunpack.c.l.b16 %v191
    %v595 = vunpack.c.h.b16 %v191
    %v596 = vunpack.c.l.b16 %v192
    %v597 = vunpack.c.h.b16 %v192
    %v598 = vunpack.c.l.b16 %v193
    %v599 = vunpack.c.h.b16 %v193
    %v600 = vpack.c.b16 %v348, %v344
    %v601 = vpack.c.b16 %v349, %v345
    %v602 = vpack.c.b16 %v350, %v346
    %v603 = vpack.c.b16 %v351, %v347
    %v604 = vpack.c.b16 %v356, %v352
    %v605 = vpack.c.b16 %v357, %v353
    %v606 = vpack.c.b16 %v358, %v354
    %v607 = vpack.c.b16 %v359, %v355
    %v608 = vpack.c.b16 %v364, %v360
    %v609 = vpack.c.b16 %v365, %v361
    %v610 = vpack.c.b16 %v366, %v362
    %v611 = vpack.c.b16 %v367, %v363
    %v612 = vpack.c.b16 %v372, %v368
    %v613 = vpack.c.b16 %v373, %v369
    %v614 = vpack.c.b16 %v374, %v370
    %v615 = vpack.c.b16 %v375, %v371
    %v616 = vpack.c.b16 %v380, %v376
    %v617 = vpack.c.b16 %v381, %v377
    %v618 = vpack.c.b16 %v382, %v378
    %v619 = vpack.c.b16 %v383, %v379
    %v620 = vpack.c.b16 %v388, %v384
    %v621 = vpack.c.b16 %v389, %v385
    %v622 = vpack.c.b16 %v390, %v386
    %v623 = vpack.c.b16 %v391, %v387
    %v624 = vpack.c.b16 %v396, %v392
    %v625 = vpack.c.b16 %v397, %v393
    %v626 = vpack.c.b16 %v398, %v394
    %v627 = vpack.c.b16 %v399, %v395
    %v628 = vpack.c.b16 %v404, %v400
    %v629 = vpack.c.b16 %v405, %v401
    %v630 = vpack.c.b16 %v406, %v402
    %v631 = vpack.c.b16 %v407, %v403
    %v632 = vpack.c.b16 %v412, %v408
    %v633 = vpack.c.b16 %v413, %v409
    %v634 = vpack.c.b16 %v414, %v410
    %v635 = vpack.c.b16 %v415, %v411
    %v636 = vpack.c.b16 %v420, %v416
    %v637 = vpack.c.b16 %v421, %v417
    %v638 = vpack.c.b16 %v422, %v418
    %v639 = vpack.c.b16 %v423, %v419
    %v640 = vpack.c.b16 %v428, %v424
    %v641 = vpack.c.b16 %v429, %v425
    %v642 = vpack.c.b16 %v430, %v426
    %v643 = vpack.c.b16 %v431, %v427
    %v644 = vpack.c.b16 %v436, %v432
    %v645 = vpack.c.b16 %v437, %v433
    %v646 = vpack.c.b16 %v438, %v434
    %v647 = vpack.c.b16 %v439, %v435
    %v648 = vpack.c.b16 %v444, %v440
    %v649 = vpack.c.b16 %v445, %v441
    %v650 = vpack.c.b16 %v446, %v442
    %v651 = vpack.c.b16 %v447, %v443
    %v652 = vpack.c.b16 %v452, %v448
    %v653 = vpack.c.b16 %v453, %v449
    %v654 = vpack.c.b16 %v454, %v450
    %v655 = vpack.c.b16 %v455, %v451
    %v656 = vpack.c.b16 %v460, %v456
    %v657 = vpack.c.b16 %v461, %v457
    %v658 = vpack.c.b16 %v462, %v458
    %v659 = vpack.c.b16 %v463, %v459
    %v660 = vpack.c.b16 %v468, %v464
    %v661 = vpack.c.b16 %v469, %v465
    %v662 = vpack.c.b16 %v470, %v466
    %v663 = vpack.c.b16 %v471, %v467
    %v664 = vpack.c.b16 %v476, %v472
    %v665 = vpack.c.b16 %v477, %v473
    %v666 = vpack.c.b16 %v478, %v474
    %v667 = vpack.c.b16 %v479, %v475
    %v668 = vpack.c.b16 %v484, %v480
    %v669 = vpack.c.b16 %v485, %v481
    %v670 = vpack.c.b16 %v486, %v482
    %v671 = vpack.c.b16 %v487, %v483
    %v672 = vpack.c.b16 %v492, %v488
    %v673 = vpack.c.b16 %v493, %v489
    %v674 = vpack.c.b16 %v494, %v490
    %v675 = vpack.c.b16 %v495, %v491
    %v676 = vpack.c.b16 %v500, %v496
    %v677 = vpack.c.b16 %v501, %v497
    %v678 = vpack.c.b16 %v502, %v498
    %v679 = vpack.c.b16 %v503, %v499
    %v680 = vpack.c.b16 %v508, %v504
    %v681 = vpack.c.b16 %v509, %v505
    %v682 = vpack.c.b16 %v510, %v506
    %v683 = vpack.c.b16 %v511, %v507
    %v684 = vpack.c.b16 %v516, %v512
    %v685 = vpack.c.b16 %v517, %v513
    %v686 = vpack.c.b16 %v518, %v514
    %v687 = vpack.c.b16 %v519, %v515
    %v688 = vpack.c.b16 %v524, %v520
    %v689 = vpack.c.b16 %v525, %v521
    %v690 = vpack.c.b16 %v526, %v522
    %v691 = vpack.c.b16 %v527, %v523
    %v692 = vpack.c.b16 %v532, %v528
    %v693 = vpack.c.b16 %v533, %v529
    %v694 = vpack.c.b16 %v534, %v530
    %v695 = vpack.c.b16 %v535, %v531
    %v696 = vpack.c.b16 %v540, %v536
    %v697 = vpack.c.b16 %v541, %v537
    %v698 = vpack.c.b16 %v542, %v538
    %v699 = vpack.c.b16 %v543, %v539
    %v700 = vpack.c.b16 %v548, %v544
    %v701 = vpack.c.b16 %v549, %v545
    %v702 = vpack.c.b16 %v550, %v546
    %v703 = vpack.c.b16 %v551, %v547
    %v704 = vpack.c.b16 %v556, %v552
    %v705 = vpack.c.b16 %v557, %v553
    %v706 = vpack.c.b16 %v558, %v554
    %v707 = vpack.c.b16 %v559, %v555
    %v708 = vpack.c.b16 %v564, %v560
    %v709 = vpack.c.b16 %v565, %v561
    %v710 = vpack.c.b16 %v566, %v562
    %v711 = vpack.c.b16 %v567, %v563
    %v712 = vpack.c.b16 %v572, %v568
    %v713 = vpack.c.b16 %v573, %v569
    %v714 = vpack.c.b16 %v574, %v570
    %v715 = vpack.c.b16 %v575, %v571
    %v716 = vpack.c.b16 %v580, %v576
    %v717 = vpack.c.b16 %v581, %v577
    %v718 = vpack.c.b16 %v582, %v578
    %v719 = vpack.c.b16 %v583, %v579
    %v720 = vpack.c.b16 %v588, %v584
    %v721 = vpack.c.b16 %v589, %v585
    %v722 = vpack.c.b16 %v590, %v586
    %v723 = vpack.c.b16 %v591, %v587
    %v724 = vpack.c.b16 %v596, %v592
    %v725 = vpack.c.b16 %v597, %v593
    %v726 = vpack.c.b16 %v598, %v594
    %v727 = vpack.c.b16 %v599, %v595
    %856 = vmatprep.subr.bf16.mxu0 %v601
    %857 = vmatpush1.bf16.msra.mxu0 %v600
    %858 = vmatprep.subr.bf16.mxu0 %v605
    %859 = vmatpush1.bf16.msra.mxu0 %v604
    %860 = vmatprep.subr.bf16.mxu0 %v609
    %861 = vmatpush1.bf16.msra.mxu0 %v608
    %862 = vmatprep.subr.bf16.mxu0 %v613
    %863 = vmatpush1.bf16.msra.mxu0 %v612
    %864 = vmatprep.subr.bf16.mxu0 %v617
    %865 = vmatpush1.bf16.msra.mxu0 %v616
    %866 = vmatprep.subr.bf16.mxu0 %v621
    %867 = vmatpush1.bf16.msra.mxu0 %v620
    %868 = vmatprep.subr.bf16.mxu0 %v625
    %869 = vmatpush1.bf16.msra.mxu0 %v624
    %870 = vmatprep.subr.bf16.mxu0 %v629
    %871 = vmatpush1.bf16.msra.mxu0 %v628
    %872 = vmatprep.subr.bf16.mxu0 %v633
    %873 = vmatpush1.bf16.msra.mxu0 %v632
    %874 = vmatprep.subr.bf16.mxu0 %v637
    %875 = vmatpush1.bf16.msra.mxu0 %v636
    %876 = vmatprep.subr.bf16.mxu0 %v641
    %877 = vmatpush1.bf16.msra.mxu0 %v640
    %878 = vmatprep.subr.bf16.mxu0 %v645
    %879 = vmatpush1.bf16.msra.mxu0 %v644
    %880 = vmatprep.subr.bf16.mxu0 %v649
    %881 = vmatpush1.bf16.msra.mxu0 %v648
    %882 = vmatprep.subr.bf16.mxu0 %v653
    %883 = vmatpush1.bf16.msra.mxu0 %v652
    %884 = vmatprep.subr.bf16.mxu0 %v657
    %885 = vmatpush1.bf16.msra.mxu0 %v656
    %886 = vmatprep.subr.bf16.mxu0 %v661
    %887 = vmatpush1.bf16.msra.mxu0 %v660
    %888 = vmatprep.mubr.bf16.mxu0 %v63
    %889 = vmatmul.mubr.bf16.gmra.mrb[0].mxu0 %v62
    %v890 = vpop.f32.mrb[0].mxu0
    %v891 = vadd.f32 %v199, %v890
    %v892 = vpop.f32.mrb[0].mxu0
    %v893 = vadd.f32 %v203, %v892
    %v894 = vpop.f32.mrb[0].mxu0
    %v895 = vpop.f32.mrb[0].mxu0
    %896 = vdwg.mxu0
    %897 = vmatprep.subr.bf16.mxu0 %v665
    %898 = vmatpush1.bf16.msra.mxu0 %v664
    %899 = vmatprep.subr.bf16.mxu0 %v669
    %900 = vmatpush1.bf16.msra.mxu0 %v668
    %901 = vmatprep.subr.bf16.mxu0 %v673
    %902 = vmatpush1.bf16.msra.mxu0 %v672
    %903 = vmatprep.subr.bf16.mxu0 %v677
    %904 = vmatpush1.bf16.msra.mxu0 %v676
    %905 = vmatprep.subr.bf16.mxu0 %v681
    %906 = vmatpush1.bf16.msra.mxu0 %v680
    %907 = vmatprep.subr.bf16.mxu0 %v685
    %908 = vmatpush1.bf16.msra.mxu0 %v684
    %909 = vmatprep.subr.bf16.mxu0 %v689
    %910 = vmatpush1.bf16.msra.mxu0 %v688
    %911 = vmatprep.subr.bf16.mxu0 %v693
    %912 = vmatpush1.bf16.msra.mxu0 %v692
    %913 = vmatprep.subr.bf16.mxu0 %v697
    %914 = vmatpush1.bf16.msra.mxu0 %v696
    %915 = vmatprep.subr.bf16.mxu0 %v701
    %916 = vmatpush1.bf16.msra.mxu0 %v700
    %917 = vmatprep.subr.bf16.mxu0 %v705
    %918 = vmatpush1.bf16.msra.mxu0 %v704
    %919 = vmatprep.subr.bf16.mxu0 %v709
    %920 = vmatpush1.bf16.msra.mxu0 %v708
    %921 = vmatprep.subr.bf16.mxu0 %v713
    %922 = vmatpush1.bf16.msra.mxu0 %v712
    %923 = vmatprep.subr.bf16.mxu0 %v717
    %924 = vmatpush1.bf16.msra.mxu0 %v716
    %925 = vmatprep.subr.bf16.mxu0 %v721
    %926 = vmatpush1.bf16.msra.mxu0 %v720
    %927 = vmatprep.subr.bf16.mxu0 %v725
    %928 = vmatpush1.bf16.msra.mxu0 %v724
    %929 = vmatprep.mubr.bf16.mxu0 %v65
    %930 = vmatmul.mubr.bf16.gmra.mrb[0].mxu0 %v64
    %v931 = vpop.f32.mrb[0].mxu0
    %v932 = vadd.f32 %v891, %v931
    %v933 = vpop.f32.mrb[0].mxu0
    %v934 = vadd.f32 %v893, %v933
    %v935 = vpop.f32.mrb[0].mxu0
    %v936 = vpop.f32.mrb[0].mxu0
    %937 = vdwg.mxu0
    %938 = vmatprep.subr.bf16.mxu0 %v603
    %939 = vmatpush1.bf16.msra.mxu0 %v602
    %940 = vmatprep.subr.bf16.mxu0 %v607
    %941 = vmatpush1.bf16.msra.mxu0 %v606
    %942 = vmatprep.subr.bf16.mxu0 %v611
    %943 = vmatpush1.bf16.msra.mxu0 %v610
    %944 = vmatprep.subr.bf16.mxu0 %v615
    %945 = vmatpush1.bf16.msra.mxu0 %v614
    %946 = vmatprep.subr.bf16.mxu0 %v619
    %947 = vmatpush1.bf16.msra.mxu0 %v618
    %948 = vmatprep.subr.bf16.mxu0 %v623
    %949 = vmatpush1.bf16.msra.mxu0 %v622
    %950 = vmatprep.subr.bf16.mxu0 %v627
    %951 = vmatpush1.bf16.msra.mxu0 %v626
    %952 = vmatprep.subr.bf16.mxu0 %v631
    %953 = vmatpush1.bf16.msra.mxu0 %v630
    %954 = vmatprep.subr.bf16.mxu0 %v635
    %955 = vmatpush1.bf16.msra.mxu0 %v634
    %956 = vmatprep.subr.bf16.mxu0 %v639
    %957 = vmatpush1.bf16.msra.mxu0 %v638
    %958 = vmatprep.subr.bf16.mxu0 %v643
    %959 = vmatpush1.bf16.msra.mxu0 %v642
    %960 = vmatprep.subr.bf16.mxu0 %v647
    %961 = vmatpush1.bf16.msra.mxu0 %v646
    %962 = vmatprep.subr.bf16.mxu0 %v651
    %963 = vmatpush1.bf16.msra.mxu0 %v650
    %964 = vmatprep.subr.bf16.mxu0 %v655
    %965 = vmatpush1.bf16.msra.mxu0 %v654
    %966 = vmatprep.subr.bf16.mxu0 %v659
    %967 = vmatpush1.bf16.msra.mxu0 %v658
    %968 = vmatprep.subr.bf16.mxu0 %v663
    %969 = vmatpush1.bf16.msra.mxu0 %v662
    %970 = vmatprep.mubr.bf16.mxu0 %v63
    %971 = vmatmul.mubr.bf16.gmra.mrb[0].mxu0 %v62
    %v972 = vpop.f32.mrb[0].mxu0
    %v973 = vadd.f32 %v207, %v972
    %v974 = vpop.f32.mrb[0].mxu0
    %v975 = vadd.f32 %v211, %v974
    %v976 = vpop.f32.mrb[0].mxu0
    %v977 = vpop.f32.mrb[0].mxu0
    %978 = vdwg.mxu0
    %979 = vmatprep.subr.bf16.mxu0 %v667
    %980 = vmatpush1.bf16.msra.mxu0 %v666
    %981 = vmatprep.subr.bf16.mxu0 %v671
    %982 = vmatpush1.bf16.msra.mxu0 %v670
    %983 = vmatprep.subr.bf16.mxu0 %v675
    %984 = vmatpush1.bf16.msra.mxu0 %v674
    %985 = vmatprep.subr.bf16.mxu0 %v679
    %986 = vmatpush1.bf16.msra.mxu0 %v678
    %987 = vmatprep.subr.bf16.mxu0 %v683
    %988 = vmatpush1.bf16.msra.mxu0 %v682
    %989 = vmatprep.subr.bf16.mxu0 %v687
    %990 = vmatpush1.bf16.msra.mxu0 %v686
    %991 = vmatprep.subr.bf16.mxu0 %v691
    %992 = vmatpush1.bf16.msra.mxu0 %v690
    %993 = vmatprep.subr.bf16.mxu0 %v695
    %994 = vmatpush1.bf16.msra.mxu0 %v694
    %995 = vmatprep.subr.bf16.mxu0 %v699
    %996 = vmatpush1.bf16.msra.mxu0 %v698
    %997 = vmatprep.subr.bf16.mxu0 %v703
    %998 = vmatpush1.bf16.msra.mxu0 %v702
    %999 = vmatprep.subr.bf16.mxu0 %v707
    %1000 = vmatpush1.bf16.msra.mxu0 %v706
    %1001 = vmatprep.subr.bf16.mxu0 %v711
    %1002 = vmatpush1.bf16.msra.mxu0 %v710
    %1003 = vmatprep.subr.bf16.mxu0 %v715
    %1004 = vmatpush1.bf16.msra.mxu0 %v714
    %1005 = vmatprep.subr.bf16.mxu0 %v719
    %1006 = vmatpush1.bf16.msra.mxu0 %v718
    %1007 = vmatprep.subr.bf16.mxu0 %v723
    %1008 = vmatpush1.bf16.msra.mxu0 %v722
    %1009 = vmatprep.subr.bf16.mxu0 %v727
    %1010 = vmatpush1.bf16.msra.mxu0 %v726
    %1011 = vmatprep.mubr.bf16.mxu0 %v65
    %1012 = vmatmul.mubr.bf16.gmra.mrb[0].mxu0 %v64
    %v1013 = vpop.f32.mrb[0].mxu0
    %v1014 = vadd.f32 %v973, %v1013
    %v1015 = vpop.f32.mrb[0].mxu0
    %v1016 = vadd.f32 %v975, %v1015
    %v1017 = vpop.f32.mrb[0].mxu0
    %v1018 = vpop.f32.mrb[0].mxu0
    %1019 = vdwg.mxu0
    %v1020 = vmax.f32 %v932, 0.0
    %v1021 = vmax.f32 %v934, 0.0
    %v1022 = vmax.f32 %v1014, 0.0
    %v1023 = vmax.f32 %v1016, 0.0
    %v1024 = vpack.c.bf16 %v1020, %v1020
    %v1025 = vpack.c.bf16 %v1021, %v1021
    %v1026 = vpack.c.bf16 %v1022, %v1022
    %v1027 = vpack.c.bf16 %v1023, %v1023
    %v1028 = vld [vmem:[#allocation7] sm:$0xf]
    %v1029 = vld [vmem:[#allocation7 + $0x4] sm:$0xf]
    %v1030 = vld [vmem:[#allocation7 + $0x8] sm:$0xf]
    %v1031 = vld [vmem:[#allocation7 + $0xc] sm:$0xf]
    %v1032 = vld [vmem:[#allocation7 + $0x10] sm:$0xf]
    %v1033 = vld [vmem:[#allocation7 + $0x14] sm:$0xf]
    %v1034 = vld [vmem:[#allocation7 + $0x18] sm:$0xf]
    %v1035 = vld [vmem:[#allocation7 + $0x1c] sm:$0xf]
    %v1036 = vld [vmem:[#allocation7 + $0x20] sm:$0xf]
    %v1037 = vld [vmem:[#allocation7 + $0x24] sm:$0xf]
    %v1038 = vld [vmem:[#allocation7 + $0x28] sm:$0xf]
    %v1039 = vld [vmem:[#allocation7 + $0x2c] sm:$0xf]
    %v1040 = vld [vmem:[#allocation7 + $0x30] sm:$0xf]
    %v1041 = vld [vmem:[#allocation7 + $0x34] sm:$0xf]
    %v1042 = vld [vmem:[#allocation7 + $0x38] sm:$0xf]
    %v1043 = vld [vmem:[#allocation7 + $0x3c] sm:$0xf]
    %v1044 = vld [vmem:[#allocation7 + $0x40] sm:$0xf]
    %v1045 = vld [vmem:[#allocation7 + $0x44] sm:$0xf]
    %v1046 = vld [vmem:[#allocation7 + $0x48] sm:$0xf]
    %v1047 = vld [vmem:[#allocation7 + $0x4c] sm:$0xf]
    %v1048 = vld [vmem:[#allocation7 + $0x50] sm:$0xf]
    %v1049 = vld [vmem:[#allocation7 + $0x54] sm:$0xf]
    %v1050 = vld [vmem:[#allocation7 + $0x58] sm:$0xf]
    %v1051 = vld [vmem:[#allocation7 + $0x5c] sm:$0xf]
    %v1052 = vld [vmem:[#allocation7 + $0x60] sm:$0xf]
    %v1053 = vld [vmem:[#allocation7 + $0x64] sm:$0xf]
    %v1054 = vld [vmem:[#allocation7 + $0x68] sm:$0xf]
    %v1055 = vld [vmem:[#allocation7 + $0x6c] sm:$0xf]
    %v1056 = vld [vmem:[#allocation7 + $0x70] sm:$0xf]
    %v1057 = vld [vmem:[#allocation7 + $0x74] sm:$0xf]
    %v1058 = vld [vmem:[#allocation7 + $0x78] sm:$0xf]
    %v1059 = vld [vmem:[#allocation7 + $0x7c] sm:$0xf]
    %v1060 = vld [vmem:[#allocation7 + $0x80] sm:$0xf]
    %v1061 = vld [vmem:[#allocation7 + $0x84] sm:$0xf]
    %v1062 = vld [vmem:[#allocation7 + $0x88] sm:$0xf]
    %v1063 = vld [vmem:[#allocation7 + $0x8c] sm:$0xf]
    %v1064 = vld [vmem:[#allocation7 + $0x90] sm:$0xf]
    %v1065 = vld [vmem:[#allocation7 + $0x94] sm:$0xf]
    %v1066 = vld [vmem:[#allocation7 + $0x98] sm:$0xf]
    %v1067 = vld [vmem:[#allocation7 + $0x9c] sm:$0xf]
    %v1068 = vld [vmem:[#allocation7 + $0xa0] sm:$0xf]
    %v1069 = vld [vmem:[#allocation7 + $0xa4] sm:$0xf]
    %v1070 = vld [vmem:[#allocation7 + $0xa8] sm:$0xf]
    %v1071 = vld [vmem:[#allocation7 + $0xac] sm:$0xf]
    %v1072 = vld [vmem:[#allocation7 + $0xb0] sm:$0xf]
    %v1073 = vld [vmem:[#allocation7 + $0xb4] sm:$0xf]
    %v1074 = vld [vmem:[#allocation7 + $0xb8] sm:$0xf]
    %v1075 = vld [vmem:[#allocation7 + $0xbc] sm:$0xf]
    %v1076 = vld [vmem:[#allocation7 + $0xc0] sm:$0xf]
    %v1077 = vld [vmem:[#allocation7 + $0xc4] sm:$0xf]
    %v1078 = vld [vmem:[#allocation7 + $0xc8] sm:$0xf]
    %v1079 = vld [vmem:[#allocation7 + $0xcc] sm:$0xf]
    %v1080 = vld [vmem:[#allocation7 + $0xd0] sm:$0xf]
    %v1081 = vld [vmem:[#allocation7 + $0xd4] sm:$0xf]
    %v1082 = vld [vmem:[#allocation7 + $0xd8] sm:$0xf]
    %v1083 = vld [vmem:[#allocation7 + $0xdc] sm:$0xf]
    %v1084 = vld [vmem:[#allocation7 + $0xe0] sm:$0xf]
    %v1085 = vld [vmem:[#allocation7 + $0xe4] sm:$0xf]
    %v1086 = vld [vmem:[#allocation7 + $0xe8] sm:$0xf]
    %v1087 = vld [vmem:[#allocation7 + $0xec] sm:$0xf]
    %v1088 = vld [vmem:[#allocation7 + $0xf0] sm:$0xf]
    %v1089 = vld [vmem:[#allocation7 + $0xf4] sm:$0xf]
    %v1090 = vld [vmem:[#allocation7 + $0xf8] sm:$0xf]
    %v1091 = vld [vmem:[#allocation7 + $0xfc] sm:$0xf]
    %v1092 = vld [vmem:[%s3 + $0x1] sm:$0x1]
    %v1093 = vlaneseq
    %v1094 = vshrl.u32 %v1093, 7
    %v1095 = vsub.s32 0, %v1094
    %v1096 = vrot.slane %v1092, %v1095
    %v1161 = vunpack.c.l.b16 %v1028
    %v1162 = vunpack.c.l.b16 %v1029
    %v1163 = vunpack.c.l.b16 %v1030
    %v1164 = vunpack.c.l.b16 %v1031
    %v1165 = vunpack.c.l.b16 %v1032
    %v1166 = vunpack.c.l.b16 %v1033
    %v1167 = vunpack.c.l.b16 %v1034
    %v1168 = vunpack.c.l.b16 %v1035
    %v1169 = vunpack.c.l.b16 %v1036
    %v1170 = vunpack.c.l.b16 %v1037
    %v1171 = vunpack.c.l.b16 %v1038
    %v1172 = vunpack.c.l.b16 %v1039
    %v1173 = vunpack.c.l.b16 %v1040
    %v1174 = vunpack.c.l.b16 %v1041
    %v1175 = vunpack.c.l.b16 %v1042
    %v1176 = vunpack.c.l.b16 %v1043
    %v1177 = vunpack.c.l.b16 %v1044
    %v1178 = vunpack.c.l.b16 %v1045
    %v1179 = vunpack.c.l.b16 %v1046
    %v1180 = vunpack.c.l.b16 %v1047
    %v1181 = vunpack.c.l.b16 %v1048
    %v1182 = vunpack.c.l.b16 %v1049
    %v1183 = vunpack.c.l.b16 %v1050
    %v1184 = vunpack.c.l.b16 %v1051
    %v1185 = vunpack.c.l.b16 %v1052
    %v1186 = vunpack.c.l.b16 %v1053
    %v1187 = vunpack.c.l.b16 %v1054
    %v1188 = vunpack.c.l.b16 %v1055
    %v1189 = vunpack.c.l.b16 %v1056
    %v1190 = vunpack.c.l.b16 %v1057
    %v1191 = vunpack.c.l.b16 %v1058
    %v1192 = vunpack.c.l.b16 %v1059
    %v1193 = vunpack.c.l.b16 %v1060
    %v1194 = vunpack.c.l.b16 %v1061
    %v1195 = vunpack.c.l.b16 %v1062
    %v1196 = vunpack.c.l.b16 %v1063
    %v1197 = vunpack.c.l.b16 %v1064
    %v1198 = vunpack.c.l.b16 %v1065
    %v1199 = vunpack.c.l.b16 %v1066
    %v1200 = vunpack.c.l.b16 %v1067
    %v1201 = vunpack.c.l.b16 %v1068
    %v1202 = vunpack.c.l.b16 %v1069
    %v1203 = vunpack.c.l.b16 %v1070
    %v1204 = vunpack.c.l.b16 %v1071
    %v1205 = vunpack.c.l.b16 %v1072
    %v1206 = vunpack.c.l.b16 %v1073
    %v1207 = vunpack.c.l.b16 %v1074
    %v1208 = vunpack.c.l.b16 %v1075
    %v1209 = vunpack.c.l.b16 %v1076
    %v1210 = vunpack.c.l.b16 %v1077
    %v1211 = vunpack.c.l.b16 %v1078
    %v1212 = vunpack.c.l.b16 %v1079
    %v1213 = vunpack.c.l.b16 %v1080
    %v1214 = vunpack.c.l.b16 %v1081
    %v1215 = vunpack.c.l.b16 %v1082
    %v1216 = vunpack.c.l.b16 %v1083
    %v1217 = vunpack.c.l.b16 %v1084
    %v1218 = vunpack.c.l.b16 %v1085
    %v1219 = vunpack.c.l.b16 %v1086
    %v1220 = vunpack.c.l.b16 %v1087
    %v1221 = vunpack.c.l.b16 %v1088
    %v1222 = vunpack.c.l.b16 %v1089
    %v1223 = vunpack.c.l.b16 %v1090
    %v1224 = vunpack.c.l.b16 %v1091
    %v1225 = vpack.c.b16 %v1162, %v1161
    %v1226 = vpack.c.b16 %v1164, %v1163
    %v1227 = vpack.c.b16 %v1166, %v1165
    %v1228 = vpack.c.b16 %v1168, %v1167
    %v1229 = vpack.c.b16 %v1170, %v1169
    %v1230 = vpack.c.b16 %v1172, %v1171
    %v1231 = vpack.c.b16 %v1174, %v1173
    %v1232 = vpack.c.b16 %v1176, %v1175
    %v1233 = vpack.c.b16 %v1178, %v1177
    %v1234 = vpack.c.b16 %v1180, %v1179
    %v1235 = vpack.c.b16 %v1182, %v1181
    %v1236 = vpack.c.b16 %v1184, %v1183
    %v1237 = vpack.c.b16 %v1186, %v1185
    %v1238 = vpack.c.b16 %v1188, %v1187
    %v1239 = vpack.c.b16 %v1190, %v1189
    %v1240 = vpack.c.b16 %v1192, %v1191
    %v1241 = vpack.c.b16 %v1194, %v1193
    %v1242 = vpack.c.b16 %v1196, %v1195
    %v1243 = vpack.c.b16 %v1198, %v1197
    %v1244 = vpack.c.b16 %v1200, %v1199
    %v1245 = vpack.c.b16 %v1202, %v1201
    %v1246 = vpack.c.b16 %v1204, %v1203
    %v1247 = vpack.c.b16 %v1206, %v1205
    %v1248 = vpack.c.b16 %v1208, %v1207
    %v1249 = vpack.c.b16 %v1210, %v1209
    %v1250 = vpack.c.b16 %v1212, %v1211
    %v1251 = vpack.c.b16 %v1214, %v1213
    %v1252 = vpack.c.b16 %v1216, %v1215
    %v1253 = vpack.c.b16 %v1218, %v1217
    %v1254 = vpack.c.b16 %v1220, %v1219
    %v1255 = vpack.c.b16 %v1222, %v1221
    %v1256 = vpack.c.b16 %v1224, %v1223
    %1289 = vmatprep.subr.bf16.mxu0 0
    %1290 = vmatpush1.bf16.msra.mxu0 %v1225
    %1291 = vmatprep.subr.bf16.mxu0 0
    %1292 = vmatpush1.bf16.msra.mxu0 %v1226
    %1293 = vmatprep.subr.bf16.mxu0 0
    %1294 = vmatpush1.bf16.msra.mxu0 %v1227
    %1295 = vmatprep.subr.bf16.mxu0 0
    %1296 = vmatpush1.bf16.msra.mxu0 %v1228
    %1297 = vmatprep.subr.bf16.mxu0 0
    %1298 = vmatpush1.bf16.msra.mxu0 %v1229
    %1299 = vmatprep.subr.bf16.mxu0 0
    %1300 = vmatpush1.bf16.msra.mxu0 %v1230
    %1301 = vmatprep.subr.bf16.mxu0 0
    %1302 = vmatpush1.bf16.msra.mxu0 %v1231
    %1303 = vmatprep.subr.bf16.mxu0 0
    %1304 = vmatpush1.bf16.msra.mxu0 %v1232
    %1305 = vmatprep.subr.bf16.mxu0 0
    %1306 = vmatpush1.bf16.msra.mxu0 %v1233
    %1307 = vmatprep.subr.bf16.mxu0 0
    %1308 = vmatpush1.bf16.msra.mxu0 %v1234
    %1309 = vmatprep.subr.bf16.mxu0 0
    %1310 = vmatpush1.bf16.msra.mxu0 %v1235
    %1311 = vmatprep.subr.bf16.mxu0 0
    %1312 = vmatpush1.bf16.msra.mxu0 %v1236
    %1313 = vmatprep.subr.bf16.mxu0 0
    %1314 = vmatpush1.bf16.msra.mxu0 %v1237
    %1315 = vmatprep.subr.bf16.mxu0 0
    %1316 = vmatpush1.bf16.msra.mxu0 %v1238
    %1317 = vmatprep.subr.bf16.mxu0 0
    %1318 = vmatpush1.bf16.msra.mxu0 %v1239
    %1319 = vmatprep.subr.bf16.mxu0 0
    %1320 = vmatpush1.bf16.msra.mxu0 %v1240
    %1321 = vmatprep.mubr.bf16.mxu0 %v1025
    %1322 = vmatmul.mubr.bf16.gmra.mrb[0].mxu0 %v1024
    %v1323 = vpop.f32.mrb[0].mxu0
    %v1324 = vadd.f32 %v1096, %v1323
    %v1325 = vpop.f32.mrb[0].mxu0
    %v1326 = vpop.f32.mrb[0].mxu0
    %v1327 = vpop.f32.mrb[0].mxu0
    %1328 = vdwg.mxu0
    %1329 = vmatprep.subr.bf16.mxu0 0
    %1330 = vmatpush1.bf16.msra.mxu0 %v1241
    %1331 = vmatprep.subr.bf16.mxu0 0
    %1332 = vmatpush1.bf16.msra.mxu0 %v1242
    %1333 = vmatprep.subr.bf16.mxu0 0
    %1334 = vmatpush1.bf16.msra.mxu0 %v1243
    %1335 = vmatprep.subr.bf16.mxu0 0
    %1336 = vmatpush1.bf16.msra.mxu0 %v1244
    %1337 = vmatprep.subr.bf16.mxu0 0
    %1338 = vmatpush1.bf16.msra.mxu0 %v1245
    %1339 = vmatprep.subr.bf16.mxu0 0
    %1340 = vmatpush1.bf16.msra.mxu0 %v1246
    %1341 = vmatprep.subr.bf16.mxu0 0
    %1342 = vmatpush1.bf16.msra.mxu0 %v1247
    %1343 = vmatprep.subr.bf16.mxu0 0
    %1344 = vmatpush1.bf16.msra.mxu0 %v1248
    %1345 = vmatprep.subr.bf16.mxu0 0
    %1346 = vmatpush1.bf16.msra.mxu0 %v1249
    %1347 = vmatprep.subr.bf16.mxu0 0
    %1348 = vmatpush1.bf16.msra.mxu0 %v1250
    %1349 = vmatprep.subr.bf16.mxu0 0
    %1350 = vmatpush1.bf16.msra.mxu0 %v1251
    %1351 = vmatprep.subr.bf16.mxu0 0
    %1352 = vmatpush1.bf16.msra.mxu0 %v1252
    %1353 = vmatprep.subr.bf16.mxu0 0
    %1354 = vmatpush1.bf16.msra.mxu0 %v1253
    %1355 = vmatprep.subr.bf16.mxu0 0
    %1356 = vmatpush1.bf16.msra.mxu0 %v1254
    %1357 = vmatprep.subr.bf16.mxu0 0
    %1358 = vmatpush1.bf16.msra.mxu0 %v1255
    %1359 = vmatprep.subr.bf16.mxu0 0
    %1360 = vmatpush1.bf16.msra.mxu0 %v1256
    %1361 = vmatprep.mubr.bf16.mxu0 %v1027
    %1362 = vmatmul.mubr.bf16.gmra.mrb[0].mxu0 %v1026
    %v1363 = vpop.f32.mrb[0].mxu0
    %v1364 = vadd.f32 %v1324, %v1363
    %v1365 = vpop.f32.mrb[0].mxu0
    %v1366 = vpop.f32.mrb[0].mxu0
    %v1367 = vpop.f32.mrb[0].mxu0
    %1368 = vdwg.mxu0
    %1369 = vst [vmem:[#allocation8] sm:$0xff] %v1364
    // Predicated region
    $region30: #{_mlp_forward.1} parent=1 // pred_check
      _
    $region31: #{_mlp_forward.1} parent=1 // pred_check_branch
      %1371 = sbr.rel (0) target = $region33
    $region32: #{_mlp_forward.1} parent=1 // pred_region
      %s1373 = ssub.s32 128, 128
      %1374 = vsyncadd [#allocation4], %s1373
      %s1376 = sshll.u32 [#allocation8], 4
      %s1377 = int_to_ptr.vmem [resolvable:$true] %s1376
      %1379 = dma.vmem_to_hbm [thread:$0]  %s1377, 128, %s4, [#allocation4]
    $region33: #{_mlp_forward.1} parent=1 // pred_fallthru
      _
    // Predicated region
    $region34: #{_mlp_forward.1} parent=1 // pred_check
      _
    $region35: #{_mlp_forward.1} parent=1 // pred_check_branch
      %1381 = sbr.rel (0) target = $region37
    $region36: #{_mlp_forward.1} parent=1 // pred_region
      %1382 = dma.done [#allocation4], 128
    $region37: #{_mlp_forward.1} parent=1 // pred_fallthru
      _
    %1383 = vsyncpa [#allocation3], 1
    %1384 = vsyncpa [#allocation6], 1
    %1385 = vsyncpa [#allocation4], 1

</llo_original>
